<compile_context>
chip_gen: v7x
topology: tpu7x:2x2x1
jax: 0.10.0
libtpu: 0.0.40
codegen_flags: <defaults>
</compile_context>

<pallas_src>
import jax
import jax.numpy as jnp
from jax.experimental import pallas as pl
from jax.experimental.pallas import tpu as pltpu

_LANES = 128
_MAX_ROWS_PER_TILE = 2048            # 2048 rows x 128 lanes = 256K pixels / step
_VMEM_BLOCK_BUDGET = 12 * 1024 * 1024  # cap on double-buffered input blocks (bytes)


def _round_up(x, m):
    return -(-x // m) * m


def _cdiv(a, b):
    return -(-a // b)


def _make_kernel(eps, q, n_k, rows_tile, r_valid, need_mask):
    """Kernel factory. Static closure: eps, q, per-split block count, tile rows,
    number of valid rows in the (possibly reshaped-only) array, and whether the
    ragged-edge row mask is needed."""

    def kernel(p_ref, l_ref, m_ref, num_ref, den_ref, num_acc, den_acc):
        k = pl.program_id(2)

        @pl.when(k == 0)
        def _init():
            num_acc[...] = jnp.zeros_like(num_acc)
            den_acc[...] = jnp.zeros_like(den_acc)

        # Cast to f32 in-kernel (inputs may be bf16/f16 -> half the HBM reads).
        p = p_ref[...].astype(jnp.float32)            # (1, C, TR, 128)
        l = l_ref[...].astype(jnp.float32)            # (1, C, TR, 128)
        m = m_ref[...].astype(jnp.float32)[0, 0]      # (TR, 128)

        d = p - l
        if q is not None:
            # loss = (|pred - label|.sum(C) + eps) ** q
            per_pix = (jnp.sum(jnp.abs(d), axis=1) + eps) ** q     # (1, TR, 128)
        else:
            # loss = sqrt((pred - label)^2.sum(C) + eps)
            per_pix = jnp.sqrt(jnp.sum(d * d, axis=1) + eps)       # (1, TR, 128)
        per_pix = per_pix[0]                                        # (TR, 128)

        if need_mask:
            # Ragged last block: rows at/after r_valid are out-of-bounds (undefined
            # data) or pure padding — zero them out of both numerator & denominator.
            s = pl.program_id(1)
            row0 = (s * n_k + k) * rows_tile
            rid = jax.lax.broadcasted_iota(jnp.int32, (rows_tile, _LANES), 0)
            valid = (rid + row0) < r_valid
            m = jnp.where(valid, m, 0.0)
            per_pix = jnp.where(valid, per_pix, 0.0)

        # Deferred reduction: fold rows into an (8,128) accumulator with pure VPU
        # adds (the reshape does not cross (8,128) tile boundaries -> free).
        num_acc[...] += jnp.sum((per_pix * m).reshape(-1, 8, _LANES), axis=0)
        den_acc[...] += jnp.sum(m.reshape(-1, 8, _LANES), axis=0)

        @pl.when(k == pl.num_programs(2) - 1)
        def _finalize():
            num_ref[...] = jnp.sum(num_acc[...]).reshape(1, 1, 1, 1)
            den_ref[...] = jnp.sum(den_acc[...]).reshape(1, 1, 1, 1)

    return kernel


def epe_loss_with_mask(pred, label, mask, eps=1e-8, q=None):
    """Pallas implementation of EpeLossWithMask.forward.

    pred, label: (B, C, H, W) — any float dtype (cast to f32 inside the kernel)
    mask:        (B, 1, H, W) — any dtype castable to f32
    returns:     (B,) float32
    """
    B, C, H, W = pred.shape
    assert label.shape == (B, C, H, W)
    assert mask.shape == (B, 1, H, W)
    N = H * W
    R = _cdiv(N, _LANES)                       # number of 128-lane pixel rows

    pred_f = pred.reshape(B, C, N)
    label_f = label.reshape(B, C, N)
    mask_f = mask.reshape(B, 1, N)

    # Pad (one HBM copy) only when lane alignment forces it: H*W not a multiple of
    # 128, or too few rows to form an 8-row sublane-aligned block. Otherwise the
    # reshape below is a free metadata op and raggedness is masked in-kernel.
    need_pad = (N % _LANES != 0) or (R < 8)
    if need_pad:
        R_arr = _round_up(max(R, 8), 8)
        N_arr = R_arr * _LANES
        pad = ((0, 0), (0, 0), (0, N_arr - N))
        pred_f = jnp.pad(pred_f, pad)
        label_f = jnp.pad(label_f, pad)
        mask_f = jnp.pad(mask_f, pad)          # zero mask => padded pixels contribute 0
    else:
        R_arr = R

    pred_f = pred_f.reshape(B, C, R_arr, _LANES)
    label_f = label_f.reshape(B, C, R_arr, _LANES)
    mask_f = mask_f.reshape(B, 1, R_arr, _LANES)

    # --- tile sizing -------------------------------------------------------
    elsz_p = jnp.dtype(pred.dtype).itemsize
    elsz_l = jnp.dtype(label.dtype).itemsize
    elsz_m = jnp.dtype(mask.dtype).itemsize
    bytes_per_row = _LANES * (C * (elsz_p + elsz_l) + elsz_m)
    max_rows_by_vmem = max(8, (_VMEM_BLOCK_BUDGET // (2 * bytes_per_row)) // 8 * 8)
    max_rows = min(_MAX_ROWS_PER_TILE, max_rows_by_vmem)

    # Split the pixel-reduction axis when B is odd/1 so v7x's second TensorCore
    # gets work (no-op cost on single-core v5e/v6e).
    n_split = 2 if (B % 2 == 1 and R_arr >= 16) else 1

    R_per = _cdiv(R_arr, n_split)
    n_k = max(1, _cdiv(R_per, max_rows))
    rows_tile = _round_up(_cdiv(R_per, n_k), 8)
    rows_tile = max(8, min(rows_tile, (R_arr // 8) * 8))
    n_k = max(1, _cdiv(R_per, rows_tile))

    coverage = n_split * n_k * rows_tile       # rows touched by all blocks
    need_mask = coverage != R_arr
    max_data_blk = (R_arr - 1) // rows_tile    # last block index that overlaps data
    needs_clamp = (n_split * n_k - 1) > max_data_blk

    if needs_clamp:
        def data_map(b, s, k):
            return (b, 0, jnp.minimum(s * n_k + k, max_data_blk), 0)
    else:
        def data_map(b, s, k):
            return (b, 0, s * n_k + k, 0)

    def out_map(b, s, k):
        return (b, s, 0, 0)

    kernel = _make_kernel(eps, q, n_k, rows_tile, R_arr, need_mask)

    bytes_accessed = (pred_f.size * elsz_p + label_f.size * elsz_l
                      + mask_f.size * elsz_m + 2 * B * n_split * 4)
    flops = B * N * (3 * C + 4)
    transcendentals = B * N

    num, den = pl.pallas_call(
        kernel,
        out_shape=(
            jax.ShapeDtypeStruct((B, n_split, 1, 1), jnp.float32),
            jax.ShapeDtypeStruct((B, n_split, 1, 1), jnp.float32),
        ),
        grid=(B, n_split, n_k),
        in_specs=[
            pl.BlockSpec((1, C, rows_tile, _LANES), data_map),
            pl.BlockSpec((1, C, rows_tile, _LANES), data_map),
            pl.BlockSpec((1, 1, rows_tile, _LANES), data_map),
        ],
        out_specs=(
            pl.BlockSpec((1, 1, 1, 1), out_map),
            pl.BlockSpec((1, 1, 1, 1), out_map),
        ),
        scratch_shapes=[
            pltpu.VMEM((8, _LANES), jnp.float32),
            pltpu.VMEM((8, _LANES), jnp.float32),
        ],
        compiler_params=pltpu.CompilerParams(
            dimension_semantics=("parallel", "parallel", "arbitrary"),
            vmem_limit_bytes=48 * 1024 * 1024,
        ),
        cost_estimate=pl.CostEstimate(
            flops=int(flops),
            transcendentals=int(transcendentals),
            bytes_accessed=int(bytes_accessed),
        ),
    )(pred_f, label_f, mask_f)

    # Combine per-split partials and finish the tiny per-batch division in JAX.
    num_b = jnp.sum(num, axis=(1, 2, 3))
    den_b = jnp.sum(den, axis=(1, 2, 3))
    return num_b / den_b


def epe_loss_with_mask_ref(pred, label, mask, eps=1e-8, q=None):
    """Pure-JAX reference mirroring the PyTorch forward exactly."""
    pred = pred.astype(jnp.float32)
    label = label.astype(jnp.float32)
    mask = mask.astype(jnp.float32)
    if q is not None:
        loss = (jnp.sum(jnp.abs(pred - label), axis=1) + eps) ** q
    else:
        loss = jnp.sqrt(jnp.sum((pred - label) ** 2, axis=1) + eps)
    loss = loss * jnp.squeeze(mask, axis=1)
    B = loss.shape[0]
    return loss.reshape(B, -1).sum(1) / mask.reshape(B, -1).sum(1)


if __name__ == "__main__":
    key = jax.random.PRNGKey(0)
    k1, k2, k3 = jax.random.split(key, 3)

    # flow-like: 2 channels
    B, C, H, W = 2, 2, 16, 16
    pred = jax.random.normal(k1, (B, C, H, W), dtype=jnp.float32)
    label = jax.random.normal(k2, (B, C, H, W), dtype=jnp.float32)
    mask = (jax.random.uniform(k3, (B, 1, H, W)) > 0.3).astype(jnp.float32)

    out = jax.block_until_ready(epe_loss_with_mask(pred, label, mask, eps=1e-8, q=None))
    ref = epe_loss_with_mask_ref(pred, label, mask, eps=1e-8, q=None)
    assert out.shape == (B,)
    assert jnp.allclose(out, ref, rtol=1e-5, atol=1e-5), (out, ref)

    # q-branch (robust loss)
    out_q = jax.block_until_ready(epe_loss_with_mask(pred, label, mask, eps=1e-8, q=0.4))
    ref_q = epe_loss_with_mask_ref(pred, label, mask, eps=1e-8, q=0.4)
    assert jnp.allclose(out_q, ref_q, rtol=1e-5, atol=1e-5), (out_q, ref_q)

    # non-multiple-of-128 spatial size (exercises the rare zero-pad path)
    H2, W2 = 7, 9
    k4, k5, k6 = jax.random.split(jax.random.PRNGKey(1), 3)
    pred2 = jax.random.normal(k4, (B, C, H2, W2), dtype=jnp.float32)
    label2 = jax.random.normal(k5, (B, C, H2, W2), dtype=jnp.float32)
    mask2 = (jax.random.uniform(k6, (B, 1, H2, W2)) > 0.3).astype(jnp.float32)
    out2 = jax.block_until_ready(epe_loss_with_mask(pred2, label2, mask2))
    ref2 = epe_loss_with_mask_ref(pred2, label2, mask2)
    assert jnp.allclose(out2, ref2, rtol=1e-5, atol=1e-5), (out2, ref2)

    # lane-aligned, pad-free path + odd batch (reduction-axis split) + ragged last
    # block masked in-kernel: B=3 odd, H*W = 33*128 rows not divisible by the tile.
    B3, H3, W3 = 3, 33, 128
    k7, k8, k9 = jax.random.split(jax.random.PRNGKey(2), 3)
    pred3 = jax.random.normal(k7, (B3, C, H3, W3), dtype=jnp.float32)
    label3 = jax.random.normal(k8, (B3, C, H3, W3), dtype=jnp.float32)
    mask3 = (jax.random.uniform(k9, (B3, 1, H3, W3)) > 0.3).astype(jnp.float32)
    out3 = jax.block_until_ready(epe_loss_with_mask(pred3, label3, mask3))
    ref3 = epe_loss_with_mask_ref(pred3, label3, mask3)
    assert jnp.allclose(out3, ref3, rtol=1e-4, atol=1e-5), (out3, ref3)

    # bf16 inputs: the f32 cast happens inside the kernel (halves HBM read traffic)
    out_bf = jax.block_until_ready(
        epe_loss_with_mask(pred.astype(jnp.bfloat16), label.astype(jnp.bfloat16), mask))
    ref_bf = epe_loss_with_mask_ref(pred.astype(jnp.bfloat16),
                                    label.astype(jnp.bfloat16), mask)
    assert jnp.allclose(out_bf, ref_bf, rtol=1e-3, atol=1e-3), (out_bf, ref_bf)

    print("KERNEL_OK")
</pallas_src>

<mosaic_0001>
module attributes {stable_mosaic.version = 11 : i64} {
  func.func @kernel(%arg0: i32, %arg1: i32, %arg2: i32, %arg3: memref<1x2x8x128xf32, #tpu.memory_space<vmem>>, %arg4: memref<1x2x8x128xf32, #tpu.memory_space<vmem>>, %arg5: memref<1x1x8x128xf32, #tpu.memory_space<vmem>>, %arg6: memref<1x1x1x1xf32, #tpu.memory_space<vmem>>, %arg7: memref<1x1x1x1xf32, #tpu.memory_space<vmem>>, %arg8: memref<8x128xf32, #tpu.memory_space<vmem>>, %arg9: memref<8x128xf32, #tpu.memory_space<vmem>>) attributes {dimension_semantics = [#tpu.dimension_semantics<parallel>, #tpu.dimension_semantics<parallel>, #tpu.dimension_semantics<arbitrary>], iteration_bounds = array<i64: 2, 1, 1>, scalar_prefetch = 0 : i64, scratch_operands = 2 : i64, tpu.core_type = #tpu.core_type<tc>, window_params = [{transform_indices = @transform_0, window_bounds = array<i64: 1, 2, 8, 128>}, {transform_indices = @transform_1, window_bounds = array<i64: 1, 2, 8, 128>}, {transform_indices = @transform_2, window_bounds = array<i64: 1, 1, 8, 128>}, {transform_indices = @transform_3, window_bounds = array<i64: 1, 1, 1, 1>}, {transform_indices = @transform_4, window_bounds = array<i64: 1, 1, 1, 1>}]} {
    %c0_i32 = arith.constant 0 : i32
    %0 = arith.cmpi eq, %arg2, %c0_i32 : i32
    %1 = arith.extui %0 : i1 to i32
    %c0_i32_0 = arith.constant 0 : i32
    %2 = arith.cmpi ne, %1, %c0_i32_0 : i32
    scf.if %2 {
      %cst_25 = arith.constant 0.000000e+00 : f32
      %28 = vector.broadcast %cst_25 : f32 to vector<8x128xf32>
      %c0_26 = arith.constant 0 : index
      %c0_27 = arith.constant 0 : index
      %29 = vector.load %arg8[%c0_26, %c0_27] : memref<8x128xf32, #tpu.memory_space<vmem>>, vector<8x128xf32>
      tpu.vector_store %arg8[%c0_26, %c0_27], %28 {strides = array<i32>} : memref<8x128xf32, #tpu.memory_space<vmem>>, vector<8x128xf32>,
      %cst_28 = arith.constant 0.000000e+00 : f32
      %30 = vector.broadcast %cst_28 : f32 to vector<8x128xf32>
      %c0_29 = arith.constant 0 : index
      %c0_30 = arith.constant 0 : index
      %31 = vector.load %arg9[%c0_29, %c0_30] : memref<8x128xf32, #tpu.memory_space<vmem>>, vector<8x128xf32>
      tpu.vector_store %arg9[%c0_29, %c0_30], %30 {strides = array<i32>} : memref<8x128xf32, #tpu.memory_space<vmem>>, vector<8x128xf32>,
    } else {
    }
    %c0 = arith.constant 0 : index
    %c0_1 = arith.constant 0 : index
    %c0_2 = arith.constant 0 : index
    %c0_3 = arith.constant 0 : index
    %3 = vector.load %arg3[%c0, %c0_1, %c0_2, %c0_3] : memref<1x2x8x128xf32, #tpu.memory_space<vmem>>, vector<1x2x8x128xf32>
    %c0_4 = arith.constant 0 : index
    %c0_5 = arith.constant 0 : index
    %c0_6 = arith.constant 0 : index
    %c0_7 = arith.constant 0 : index
    %4 = vector.load %arg4[%c0_4, %c0_5, %c0_6, %c0_7] : memref<1x2x8x128xf32, #tpu.memory_space<vmem>>, vector<1x2x8x128xf32>
    %c0_8 = arith.constant 0 : index
    %c0_9 = arith.constant 0 : index
    %c0_10 = arith.constant 0 : index
    %c0_11 = arith.constant 0 : index
    %5 = vector.load %arg5[%c0_8, %c0_9, %c0_10, %c0_11] : memref<1x1x8x128xf32, #tpu.memory_space<vmem>>, vector<1x1x8x128xf32>
    %6 = vector.shape_cast %5 : vector<1x1x8x128xf32> to vector<8x128xf32>
    %7 = arith.subf %3, %4 : vector<1x2x8x128xf32>
    %8 = arith.mulf %7, %7 : vector<1x2x8x128xf32>
    %cst = arith.constant dense<0.000000e+00> : vector<1x8x128xf32>
    %9 = vector.multi_reduction <add>, %8, %cst [1] : vector<1x2x8x128xf32> to vector<1x8x128xf32>
    %cst_12 = arith.constant 9.99999993E-9 : f32
    %10 = vector.broadcast %cst_12 : f32 to vector<1x8x128xf32>
    %11 = arith.addf %9, %10 : vector<1x8x128xf32>
    %12 = math.sqrt %11 : vector<1x8x128xf32>
    %13 = vector.shape_cast %12 : vector<1x8x128xf32> to vector<8x128xf32>
    %c0_13 = arith.constant 0 : index
    %c0_14 = arith.constant 0 : index
    %14 = vector.load %arg8[%c0_13, %c0_14] : memref<8x128xf32, #tpu.memory_space<vmem>>, vector<8x128xf32>
    %15 = arith.mulf %13, %6 : vector<8x128xf32>
    %16 = vector.shape_cast %15 : vector<8x128xf32> to vector<1x8x128xf32>
    %cst_15 = arith.constant dense<0.000000e+00> : vector<8x128xf32>
    %17 = vector.multi_reduction <add>, %16, %cst_15 [0] : vector<1x8x128xf32> to vector<8x128xf32>
    %18 = arith.addf %14, %17 : vector<8x128xf32>
    %c0_16 = arith.constant 0 : index
    %c0_17 = arith.constant 0 : index
    %19 = vector.load %arg8[%c0_16, %c0_17] : memref<8x128xf32, #tpu.memory_space<vmem>>, vector<8x128xf32>
    tpu.vector_store %arg8[%c0_16, %c0_17], %18 {strides = array<i32>} : memref<8x128xf32, #tpu.memory_space<vmem>>, vector<8x128xf32>,
    %c0_18 = arith.constant 0 : index
    %c0_19 = arith.constant 0 : index
    %20 = vector.load %arg9[%c0_18, %c0_19] : memref<8x128xf32, #tpu.memory_space<vmem>>, vector<8x128xf32>
    %21 = vector.shape_cast %6 : vector<8x128xf32> to vector<1x8x128xf32>
    %cst_20 = arith.constant dense<0.000000e+00> : vector<8x128xf32>
    %22 = vector.multi_reduction <add>, %21, %cst_20 [0] : vector<1x8x128xf32> to vector<8x128xf32>
    %23 = arith.addf %20, %22 : vector<8x128xf32>
    %c0_21 = arith.constant 0 : index
    %c0_22 = arith.constant 0 : index
    %24 = vector.load %arg9[%c0_21, %c0_22] : memref<8x128xf32, #tpu.memory_space<vmem>>, vector<8x128xf32>
    tpu.vector_store %arg9[%c0_21, %c0_22], %23 {strides = array<i32>} : memref<8x128xf32, #tpu.memory_space<vmem>>, vector<8x128xf32>,
    %c0_i32_23 = arith.constant 0 : i32
    %25 = arith.cmpi eq, %arg2, %c0_i32_23 : i32
    %26 = arith.extui %25 : i1 to i32
    %c0_i32_24 = arith.constant 0 : i32
    %27 = arith.cmpi ne, %26, %c0_i32_24 : i32
    scf.if %27 {
      %c0_25 = arith.constant 0 : index
      %c0_26 = arith.constant 0 : index
      %28 = vector.load %arg8[%c0_25, %c0_26] : memref<8x128xf32, #tpu.memory_space<vmem>>, vector<8x128xf32>
      %29 = vector.shape_cast %28 : vector<8x128xf32> to vector<1x8x128xf32>
      %cst_27 = arith.constant dense<0.000000e+00> : vector<1xf32>
      %30 = vector.multi_reduction <add>, %29, %cst_27 [1, 2] : vector<1x8x128xf32> to vector<1xf32>
      %31 = vector.shape_cast %30 : vector<1xf32> to vector<1x1x1xf32>
      %32 = vector.extract %31[0, 0, 0] : f32 from vector<1x1x1xf32>
      %33 = vector.broadcast %32 : f32 to vector<1x1x1x1xf32>
      %c0_28 = arith.constant 0 : index
      %c0_29 = arith.constant 0 : index
      %c0_30 = arith.constant 0 : index
      %c0_31 = arith.constant 0 : index
      %34 = vector.load %arg6[%c0_28, %c0_29, %c0_30, %c0_31] : memref<1x1x1x1xf32, #tpu.memory_space<vmem>>, vector<1x1x1x1xf32>
      tpu.vector_store %arg6[%c0_28, %c0_29, %c0_30, %c0_31], %33 {strides = array<i32>} : memref<1x1x1x1xf32, #tpu.memory_space<vmem>>, vector<1x1x1x1xf32>,
      %c0_32 = arith.constant 0 : index
      %c0_33 = arith.constant 0 : index
      %35 = vector.load %arg9[%c0_32, %c0_33] : memref<8x128xf32, #tpu.memory_space<vmem>>, vector<8x128xf32>
      %36 = vector.shape_cast %35 : vector<8x128xf32> to vector<1x8x128xf32>
      %cst_34 = arith.constant dense<0.000000e+00> : vector<1xf32>
      %37 = vector.multi_reduction <add>, %36, %cst_34 [1, 2] : vector<1x8x128xf32> to vector<1xf32>
      %38 = vector.shape_cast %37 : vector<1xf32> to vector<1x1x1xf32>
      %39 = vector.extract %38[0, 0, 0] : f32 from vector<1x1x1xf32>
      %40 = vector.broadcast %39 : f32 to vector<1x1x1x1xf32>
      %c0_35 = arith.constant 0 : index
      %c0_36 = arith.constant 0 : index
      %c0_37 = arith.constant 0 : index
      %c0_38 = arith.constant 0 : index
      %41 = vector.load %arg7[%c0_35, %c0_36, %c0_37, %c0_38] : memref<1x1x1x1xf32, #tpu.memory_space<vmem>>, vector<1x1x1x1xf32>
      tpu.vector_store %arg7[%c0_35, %c0_36, %c0_37, %c0_38], %40 {strides = array<i32>} : memref<1x1x1x1xf32, #tpu.memory_space<vmem>>, vector<1x1x1x1xf32>,
    } else {
    }
    return
  }
  func.func @transform_0(%arg0: i32, %arg1: i32, %arg2: i32) -> (i32, i32, i32, i32) {
    %c1_i32 = arith.constant 1 : i32
    %0 = arith.muli %arg1, %c1_i32 : i32
    %1 = arith.addi %0, %arg2 : i32
    %c0_i32 = arith.constant 0 : i32
    %c0_i32_0 = arith.constant 0 : i32
    %c0_i32_1 = arith.constant 0 : i32
    return %arg0, %c0_i32, %1, %c0_i32_0 : i32, i32, i32, i32
  }
  func.func @transform_1(%arg0: i32, %arg1: i32, %arg2: i32) -> (i32, i32, i32, i32) {
    %c1_i32 = arith.constant 1 : i32
    %0 = arith.muli %arg1, %c1_i32 : i32
    %1 = arith.addi %0, %arg2 : i32
    %c0_i32 = arith.constant 0 : i32
    %c0_i32_0 = arith.constant 0 : i32
    %c0_i32_1 = arith.constant 0 : i32
    return %arg0, %c0_i32, %1, %c0_i32_0 : i32, i32, i32, i32
  }
  func.func @transform_2(%arg0: i32, %arg1: i32, %arg2: i32) -> (i32, i32, i32, i32) {
    %c1_i32 = arith.constant 1 : i32
    %0 = arith.muli %arg1, %c1_i32 : i32
    %1 = arith.addi %0, %arg2 : i32
    %c0_i32 = arith.constant 0 : i32
    %c0_i32_0 = arith.constant 0 : i32
    %c0_i32_1 = arith.constant 0 : i32
    return %arg0, %c0_i32, %1, %c0_i32_0 : i32, i32, i32, i32
  }
  func.func @transform_3(%arg0: i32, %arg1: i32, %arg2: i32) -> (i32, i32, i32, i32) {
    %c0_i32 = arith.constant 0 : i32
    %c0_i32_0 = arith.constant 0 : i32
    %c0_i32_1 = arith.constant 0 : i32
    return %arg0, %arg1, %c0_i32, %c0_i32_0 : i32, i32, i32, i32
  }
  func.func @transform_4(%arg0: i32, %arg1: i32, %arg2: i32) -> (i32, i32, i32, i32) {
    %c0_i32 = arith.constant 0 : i32
    %c0_i32_0 = arith.constant 0 : i32
    %c0_i32_1 = arith.constant 0 : i32
    return %arg0, %arg1, %c0_i32, %c0_i32_0 : i32, i32, i32, i32
  }
}

</mosaic_0001>

<llo_original>
// kernel: tpu_custom_call.1
$region0: #{tpu_custom_call.1}
  #allocation0 [shape = 'u32[]', space=smem, size = 0x4, offset = 0x4, fixed_abs, tag = 'smem constant byte address 0x4 - core index']
  #allocation1 [shape = 'u32[144,128]{1,0:T(1,128)}', space=vmem, size = 0x12000, scoped, tag = 'internal scratch']
  #allocation2 [shape = 'f32[8,128]{1,0:T(8,128)}', space=vmem, size = 0x1000, scoped, tag = 'scratch operand']
  #allocation3 [shape = 'f32[8,128]{1,0:T(8,128)}', space=vmem, size = 0x1000, scoped, tag = 'scratch operand']
  %s0 = inlined_call_operand.hbm [shape: f32[2,2,8,128], index: 0, kind: input, shape index: {}]
  %s1 = inlined_call_operand.hbm [shape: f32[2,2,8,128], index: 1, kind: input, shape index: {}]
  %s2 = inlined_call_operand.hbm [shape: f32[2,1,8,128], index: 2, kind: input, shape index: {}]
  %s3 = inlined_call_operand.vmem [shape: f32[2,1,1,1], index: 3, kind: output, shape index: {0}]
  %s4 = inlined_call_operand.vmem [shape: f32[2,1,1,1], index: 4, kind: output, shape index: {1}]
  %5 = xla_tuple %s3, %s4
  %s6 = sld [smem:[#allocation0]]
  $region73: #{tpu_custom_call.1} parent=0
    _
  %s8 = ssub.s32 1, %s6
  %s9 = scalar_select 0, %s8, %s6
  $region1: #{tpu_custom_call.1} parent=0
    #allocation4 [shape = 'u8[16384]{0}', space=vmem, size = 0x4000, scoped, tag = 'input window, operand 0']
    #allocation5 [shape = 's32[2]{0}', space=sflag, size = 0x8, scoped, tag = 'scoped memory for tpu_custom_call.1']
    #allocation6 [shape = 'u8[16384]{0}', space=vmem, size = 0x4000, scoped, tag = 'input window, operand 1']
    #allocation7 [shape = 's32[2]{0}', space=sflag, size = 0x8, scoped, tag = 'scoped memory for tpu_custom_call.1']
    #allocation8 [shape = 'u8[8192]{0}', space=vmem, size = 0x2000, scoped, tag = 'input window, operand 2']
    %10 = vsyncpa [#allocation5], 0
    %s11 = scalar_lea.sflag [#allocation5], 1
    %12 = vsyncpa %s11, 0
    %13 = vsyncpa [#allocation7], 0
    %s14 = scalar_lea.sflag [#allocation7], 1
    %15 = vsyncpa %s14, 0
    loop: start=0, step=1, limit=4
    $region2: #{tpu_custom_call.1} parent=1 // loop_pre_header
      _
    $region3: #{tpu_custom_call.1} parent=1 // loop_header
      %s17 = sphi 0, %s21
      %p18 = scmp.ge.s32.totalorder %s17, 4
      %s24 = sphi 0, %s43
      %s25 = sphi 0, %s39
      %s26 = sphi 0, %s35
      %s27 = sphi 0, %s24
      %s28 = sphi 0, %s25
      %s29 = sphi 0, %s26
      %s30 = sphi 0, %s27
      %s31 = sphi 0, %s28
      %s32 = sphi 0, %s29
      %s50 = sphi 0, %s52
      %s53 = sphi 0, %s50
      %s54 = sphi 0, %s53
      %s70 = sphi 0, %s54
      %s80 = sphi 0, %s82
      %s83 = sphi 0, %s80
      %s84 = sphi 0, %s83
      %s100 = sphi 0, %s84
      %s110 = sphi 0, %s112
      %s113 = sphi 0, %s110
      %s114 = sphi 0, %s113
      %s130 = sphi 0, %s114
      %s138 = sphi 0, %s140
      %s141 = sphi 0, %s138
      %s142 = sphi 0, %s141
      %s158 = sphi 0, %s142
      %s166 = sphi 0, %s168
      %s169 = sphi 0, %s166
      %s170 = sphi 0, %s169
      %s186 = sphi 0, %s170
    $region4: #{tpu_custom_call.1} parent=1 // loop_header_branch
      %20 = sbr.rel (%p18) target = $region8
    $region5: #{tpu_custom_call.1} parent=1 // loop_body
      %s22 = ssub.s32 %s17, 1
      %s23 = ssub.s32 %s17, 2
      %s33 = sadd.s32 1, %s26
      %p34 = scmp.ge.s32.totalorder %s33, 1
      %s35 = scalar_select %p34, 0, %s33
      %s36 = sadd.s32 1, %s25
      %s37 = scalar_select %p34, %s36, %s25
      %p38 = scmp.ge.s32.totalorder %s37, 1
      %s39 = scalar_select %p38, 0, %s37
      %s40 = sadd.s32 1, %s24
      %s41 = scalar_select %p38, %s40, %s24
      %p42 = scmp.ge.s32.totalorder %s41, 2
      %s43 = scalar_select %p42, 0, %s41
      %s44 = sadd.s32 %s25, %s26
      %s45 = sadd.s32 %s39, %s35
      %s46 = ssub.s32 %s24, %s43
      %s47 = ssub.s32 %s44, %s45
      %s48 = sor.u32 %s46, %s47
      %p49 = scmp.eq.s32.totalorder %s48, 0
      %s51 = sadd.s32 %s50, 1
      %s52 = scalar_select %p49, %s50, %s51
      %p55 = pneg %p49
      %p56 = scmp.eq.s32.totalorder %s17, 1
      %p57 = por %p55, %p56
      %p58 = scmp.ne.s32.totalorder %s50, %s53
      %p59 = scmp.eq.s32.totalorder %s17, 0
      %p60 = por %p58, %p59
      %p61 = scmp.ne.s32.totalorder %s50, %s53
      %p62 = scmp.eq.s32.totalorder %s22, 1
      %p63 = por %p61, %p62
      %p64 = scmp.ne.s32.totalorder %s53, %s54
      %p65 = scmp.eq.s32.totalorder %s22, 0
      %p66 = por %p64, %p65
      %p67 = scmp.ne.s32.totalorder %s53, %s54
      %p68 = scmp.eq.s32.totalorder %s23, 1
      %p69 = por %p67, %p68
      %p71 = scmp.ne.s32.totalorder %s54, %s70
      %p72 = scmp.eq.s32.totalorder %s23, 0
      %p73 = por %p71, %p72
      %s74 = sadd.s32 %s25, %s26
      %s75 = sadd.s32 %s39, %s35
      %s76 = ssub.s32 %s24, %s43
      %s77 = ssub.s32 %s74, %s75
      %s78 = sor.u32 %s76, %s77
      %p79 = scmp.eq.s32.totalorder %s78, 0
      %s81 = sadd.s32 %s80, 1
      %s82 = scalar_select %p79, %s80, %s81
      %p85 = pneg %p79
      %p86 = scmp.eq.s32.totalorder %s17, 1
      %p87 = por %p85, %p86
      %p88 = scmp.ne.s32.totalorder %s80, %s83
      %p89 = scmp.eq.s32.totalorder %s17, 0
      %p90 = por %p88, %p89
      %p91 = scmp.ne.s32.totalorder %s80, %s83
      %p92 = scmp.eq.s32.totalorder %s22, 1
      %p93 = por %p91, %p92
      %p94 = scmp.ne.s32.totalorder %s83, %s84
      %p95 = scmp.eq.s32.totalorder %s22, 0
      %p96 = por %p94, %p95
      %p97 = scmp.ne.s32.totalorder %s83, %s84
      %p98 = scmp.eq.s32.totalorder %s23, 1
      %p99 = por %p97, %p98
      %p101 = scmp.ne.s32.totalorder %s84, %s100
      %p102 = scmp.eq.s32.totalorder %s23, 0
      %p103 = por %p101, %p102
      %s104 = sadd.s32 %s25, %s26
      %s105 = sadd.s32 %s39, %s35
      %s106 = ssub.s32 %s24, %s43
      %s107 = ssub.s32 %s104, %s105
      %s108 = sor.u32 %s106, %s107
      %p109 = scmp.eq.s32.totalorder %s108, 0
      %s111 = sadd.s32 %s110, 1
      %s112 = scalar_select %p109, %s110, %s111
      %p115 = pneg %p109
      %p116 = scmp.eq.s32.totalorder %s17, 1
      %p117 = por %p115, %p116
      %p118 = scmp.ne.s32.totalorder %s110, %s113
      %p119 = scmp.eq.s32.totalorder %s17, 0
      %p120 = por %p118, %p119
      %p121 = scmp.ne.s32.totalorder %s110, %s113
      %p122 = scmp.eq.s32.totalorder %s22, 1
      %p123 = por %p121, %p122
      %p124 = scmp.ne.s32.totalorder %s113, %s114
      %p125 = scmp.eq.s32.totalorder %s22, 0
      %p126 = por %p124, %p125
      %p127 = scmp.ne.s32.totalorder %s113, %s114
      %p128 = scmp.eq.s32.totalorder %s23, 1
      %p129 = por %p127, %p128
      %p131 = scmp.ne.s32.totalorder %s114, %s130
      %p132 = scmp.eq.s32.totalorder %s23, 0
      %p133 = por %p131, %p132
      %s134 = ssub.s32 %s24, %s43
      %s135 = ssub.s32 %s25, %s39
      %s136 = sor.u32 %s134, %s135
      %p137 = scmp.eq.s32.totalorder %s136, 0
      %s139 = sadd.s32 %s138, 1
      %s140 = scalar_select %p137, %s138, %s139
      %p143 = pneg %p137
      %p144 = scmp.eq.s32.totalorder %s17, 1
      %p145 = por %p143, %p144
      %p146 = scmp.ne.s32.totalorder %s138, %s141
      %p147 = scmp.eq.s32.totalorder %s17, 0
      %p148 = por %p146, %p147
      %p149 = scmp.ne.s32.totalorder %s138, %s141
      %p150 = scmp.eq.s32.totalorder %s22, 1
      %p151 = por %p149, %p150
      %p152 = scmp.ne.s32.totalorder %s141, %s142
      %p153 = scmp.eq.s32.totalorder %s22, 0
      %p154 = por %p152, %p153
      %p155 = scmp.ne.s32.totalorder %s141, %s142
      %p156 = scmp.eq.s32.totalorder %s23, 1
      %p157 = por %p155, %p156
      %p159 = scmp.ne.s32.totalorder %s142, %s158
      %p160 = scmp.eq.s32.totalorder %s23, 0
      %p161 = por %p159, %p160
      %s162 = ssub.s32 %s24, %s43
      %s163 = ssub.s32 %s25, %s39
      %s164 = sor.u32 %s162, %s163
      %p165 = scmp.eq.s32.totalorder %s164, 0
      %s167 = sadd.s32 %s166, 1
      %s168 = scalar_select %p165, %s166, %s167
      %p171 = pneg %p165
      %p172 = scmp.eq.s32.totalorder %s17, 1
      %p173 = por %p171, %p172
      %p174 = scmp.ne.s32.totalorder %s166, %s169
      %p175 = scmp.eq.s32.totalorder %s17, 0
      %p176 = por %p174, %p175
      %p177 = scmp.ne.s32.totalorder %s166, %s169
      %p178 = scmp.eq.s32.totalorder %s22, 1
      %p179 = por %p177, %p178
      %p180 = scmp.ne.s32.totalorder %s169, %s170
      %p181 = scmp.eq.s32.totalorder %s22, 0
      %p182 = por %p180, %p181
      %p183 = scmp.ne.s32.totalorder %s169, %s170
      %p184 = scmp.eq.s32.totalorder %s23, 1
      %p185 = por %p183, %p184
      %p187 = scmp.ne.s32.totalorder %s170, %s186
      %p188 = scmp.eq.s32.totalorder %s23, 0
      %p189 = por %p187, %p188
      %p190 = scmp.le.s32.totalorder 1, %s17
      %p191 = scmp.lt.s32.totalorder %s17, 3
      %p192 = pnand %p190, %p191
      %p193 = pneg %p192
      // Predicated region
      $region9: #{tpu_custom_call.1} parent=5 // pred_check
        _
      $region10: #{tpu_custom_call.1} parent=5 // pred_check_branch
        %195 = sbr.rel (%p192) target = $region12
      $region11: #{tpu_custom_call.1} parent=5 // pred_region
        %s196 = ssub.s32 %s17, 1
      $region12: #{tpu_custom_call.1} parent=5 // pred_fallthru
        _
      %p197 = scmp.lt.s32.totalorder %s17, 2
      // Predicated region
      $region13: #{tpu_custom_call.1} parent=5 // pred_check
        %p198 = pneg %p197
      $region14: #{tpu_custom_call.1} parent=5 // pred_check_branch
        %200 = sbr.rel (%p198) target = $region16
      $region15: #{tpu_custom_call.1} parent=5 // pred_region
        // Predicated region
        $region17: #{tpu_custom_call.1} parent=15 // pred_check
          %p201 = pneg %p60
        $region18: #{tpu_custom_call.1} parent=15 // pred_check_branch
          %203 = sbr.rel (%p201) target = $region20
        $region19: #{tpu_custom_call.1} parent=15 // pred_region
          %s204 = sand.u32 %s50, 1
          %s205 = scalar_lea.sflag [#allocation5], %s204
          %s206 = sand.u32 %s50, 1
          %s207 = smul.addr %s206, 16
          %s208 = scalar_lea.vmem [#allocation4], %s207
          %s209 = sadd.s32 %s25, %s26
          %s211 = ssub.s32 256, 256
          %212 = vsyncadd %s205, %s211
          %s213 = smul.addr %s24, 2
          %s214 = sadd.s32 %s209, %s213
          %s215 = smul.addr %s214, 128
          %s216 = scalar_lea.hbm %s0, %s215
          %s217 = sshll.u32 %s208, 4
          %s218 = int_to_ptr.vmem [resolvable:$true] %s217
          %223 = dma.hbm_to_vmem [thread:$0]  %s216, 256, %s218, %s205, 128, 128, 8
        $region20: #{tpu_custom_call.1} parent=15 // pred_fallthru
          _
        // Predicated region
        $region21: #{tpu_custom_call.1} parent=15 // pred_check
          %p224 = pneg %p90
        $region22: #{tpu_custom_call.1} parent=15 // pred_check_branch
          %226 = sbr.rel (%p224) target = $region24
        $region23: #{tpu_custom_call.1} parent=15 // pred_region
          %s227 = sand.u32 %s17, 1
          %s228 = scalar_lea.sflag [#allocation7], %s227
          %s229 = sand.u32 %s80, 1
          %s230 = smul.addr %s229, 16
          %s231 = scalar_lea.vmem [#allocation6], %s230
          %s232 = sadd.s32 %s25, %s26
          %s234 = ssub.s32 256, 256
          %235 = vsyncadd %s228, %s234
          %s236 = smul.addr %s24, 2
          %s237 = sadd.s32 %s232, %s236
          %s238 = smul.addr %s237, 128
          %s239 = scalar_lea.hbm %s1, %s238
          %s240 = sshll.u32 %s231, 4
          %s241 = int_to_ptr.vmem [resolvable:$true] %s240
          %246 = dma.hbm_to_vmem [thread:$0]  %s239, 256, %s241, %s228, 128, 128, 8
        $region24: #{tpu_custom_call.1} parent=15 // pred_fallthru
          _
        // Predicated region
        $region25: #{tpu_custom_call.1} parent=15 // pred_check
          %p247 = pneg %p120
        $region26: #{tpu_custom_call.1} parent=15 // pred_check_branch
          %249 = sbr.rel (%p247) target = $region28
        $region27: #{tpu_custom_call.1} parent=15 // pred_region
          %s250 = sand.u32 %s17, 1
          %s251 = scalar_lea.sflag [#allocation7], %s250
          %s252 = sand.u32 %s110, 1
          %s253 = smul.addr %s252, 8
          %s254 = scalar_lea.vmem [#allocation8], %s253
          %s255 = sadd.s32 %s25, %s26
          %s257 = ssub.s32 128, 128
          %258 = vsyncadd %s251, %s257
          %s259 = sadd.s32 %s255, %s24
          %s260 = smul.addr %s259, 128
          %s261 = scalar_lea.hbm %s2, %s260
          %s263 = sshll.u32 %s254, 4
          %s264 = int_to_ptr.vmem [resolvable:$true] %s263
          %266 = dma.hbm_to_vmem [thread:$0]  %s261, 128, %s264, %s251
        $region28: #{tpu_custom_call.1} parent=15 // pred_fallthru
          _
      $region16: #{tpu_custom_call.1} parent=5 // pred_fallthru
        _
      %p267 = scmp.le.s32.totalorder 1, %s17
      %p268 = scmp.lt.s32.totalorder %s17, 3
      %p269 = pnand %p267, %p268
      %p270 = pneg %p269
      // Predicated region
      $region29: #{tpu_custom_call.1} parent=5 // pred_check
        _
      $region30: #{tpu_custom_call.1} parent=5 // pred_check_branch
        %272 = sbr.rel (%p269) target = $region32
      $region31: #{tpu_custom_call.1} parent=5 // pred_region
        %s273 = ssub.s32 %s17, 1
        %s274 = sand.u32 %s53, 1
        %s275 = scalar_lea.sflag [#allocation5], %s274
        %s276 = sand.u32 %s53, 1
        %s277 = smul.addr %s276, 16
        %s278 = scalar_lea.vmem [#allocation4], %s277
        // Predicated region
        $region33: #{tpu_custom_call.1} parent=31 // pred_check
          %p279 = pneg %p66
        $region34: #{tpu_custom_call.1} parent=31 // pred_check_branch
          %281 = sbr.rel (%p279) target = $region36
        $region35: #{tpu_custom_call.1} parent=31 // pred_region
          %282 = dma.done %s275, 256
        $region36: #{tpu_custom_call.1} parent=31 // pred_fallthru
          _
        %s283 = sand.u32 %s22, 1
        %s284 = scalar_lea.sflag [#allocation7], %s283
        %s285 = sand.u32 %s83, 1
        %s286 = smul.addr %s285, 16
        %s287 = scalar_lea.vmem [#allocation6], %s286
        // Predicated region
        $region37: #{tpu_custom_call.1} parent=31 // pred_check
          %p288 = pneg %p96
        $region38: #{tpu_custom_call.1} parent=31 // pred_check_branch
          %290 = sbr.rel (%p288) target = $region40
        $region39: #{tpu_custom_call.1} parent=31 // pred_region
          %291 = dma.done %s284, 256
        $region40: #{tpu_custom_call.1} parent=31 // pred_fallthru
          _
        %s292 = sand.u32 %s22, 1
        %s293 = scalar_lea.sflag [#allocation7], %s292
        %s294 = sand.u32 %s113, 1
        %s295 = smul.addr %s294, 8
        %s296 = scalar_lea.vmem [#allocation8], %s295
        // Predicated region
        $region41: #{tpu_custom_call.1} parent=31 // pred_check
          %p297 = pneg %p126
        $region42: #{tpu_custom_call.1} parent=31 // pred_check_branch
          %299 = sbr.rel (%p297) target = $region44
        $region43: #{tpu_custom_call.1} parent=31 // pred_region
          %300 = dma.done %s293, 128
        $region44: #{tpu_custom_call.1} parent=31 // pred_fallthru
          _
        %s301 = sand.u32 %s53, 1
        %s302 = scalar_lea.sflag [#allocation5], %s301
        %s303 = sand.u32 %s53, 1
        %s304 = smul.addr %s303, 16
        %s305 = scalar_lea.vmem [#allocation4], %s304
        %p306 = pneg %p66
        %p307 = pneg %p63
        %s308 = sand.u32 %s22, 1
        %s309 = scalar_lea.sflag [#allocation7], %s308
        %s310 = sand.u32 %s83, 1
        %s311 = smul.addr %s310, 16
        %s312 = scalar_lea.vmem [#allocation6], %s311
        %p313 = pneg %p96
        %p314 = pneg %p93
        %s315 = sand.u32 %s22, 1
        %s316 = scalar_lea.sflag [#allocation7], %s315
        %s317 = sand.u32 %s113, 1
        %s318 = smul.addr %s317, 8
        %s319 = scalar_lea.vmem [#allocation8], %s318
        %p320 = pneg %p126
        %p321 = pneg %p123
        %p322 = pneg %p154
        %p323 = pneg %p151
        %p324 = scmp.lt.s32.totalorder %s27, 1
        %s325 = scalar_select %p324, %s27, 1
        %p326 = scmp.lt.s32.totalorder %s28, 0
        %s327 = scalar_select %p326, %s28, 0
        %s328 = sadd.s32 %s327, %s325
        %s329 = scalar_lea.vmem %s3, %s328
        %p330 = pneg %p182
        %p331 = pneg %p179
        %p332 = scmp.lt.s32.totalorder %s27, 1
        %s333 = scalar_select %p332, %s27, 1
        %p334 = scmp.lt.s32.totalorder %s28, 0
        %s335 = scalar_select %p334, %s28, 0
        %s336 = sadd.s32 %s335, %s333
        %s337 = scalar_lea.vmem %s4, %s336
        %s338 = sadd.s32 %s28, %s29
        %s339 = sadd.s32 %s28, %s29
        %s340 = sadd.s32 %s28, %s29
        %p341 = scmp.lt.s32.totalorder %s27, 1
        %s342 = scalar_select %p341, %s27, 1
        %p343 = scmp.lt.s32.totalorder %s28, 0
        %s344 = scalar_select %p343, %s28, 0
        %s345 = sadd.s32 %s344, %s342
        %s346 = scalar_lea.vmem %s3, %s345
        %p347 = scmp.lt.s32.totalorder %s27, 1
        %s348 = scalar_select %p347, %s27, 1
        %p349 = scmp.lt.s32.totalorder %s28, 0
        %s350 = scalar_select %p349, %s28, 0
        %s351 = sadd.s32 %s350, %s348
        %s352 = scalar_lea.vmem %s4, %s351
        %p353 = scmp.eq.s32.totalorder %s29, 0
        // Predicated region
        $region45: #{tpu_custom_call.1} parent=31 // pred_check
          %p354 = pneg %p353
        $region46: #{tpu_custom_call.1} parent=31 // pred_check_branch
          %356 = sbr.rel (%p354) target = $region48
        $region47: #{tpu_custom_call.1} parent=31 // pred_region
          %357 = vst [vmem:[#allocation2] sm:$0xff] 0.0
          %358 = vst [vmem:[#allocation3] sm:$0xff] 0.0
        $region48: #{tpu_custom_call.1} parent=31 // pred_fallthru
          _
        %v359 = vld [vmem:[%s278] sm:$0xff]
        %v360 = vld [vmem:[%s278 + $0x8] sm:$0xff]
        %v361 = vld [vmem:[%s287] sm:$0xff]
        %v362 = vld [vmem:[%s287 + $0x8] sm:$0xff]
        %v363 = vld [vmem:[%s296] sm:$0xff]
        %v364 = vsub.f32 %v359, %v361
        %v365 = vsub.f32 %v360, %v362
        %v366 = vmul.f32 %v364, %v364
        %v367 = vmul.f32 %v365, %v365
        %v368 = vadd.f32 %v366, %v367
        %v369 = vadd.f32 %v368, 1e-08
        %v370 = vrsqrt.pop %v369
        %v371 = vmul.f32 %v369, %v370
        %vm372 = vcmp.eq.f32.partialorder %v369, inf
        %v373 = vsel %vm372, %v369, %v371
        %vm374 = vcmp.eq.f32.partialorder %v369, 0.0
        %v375 = vand.u32 %v369, 2147483648
        %v376 = vsel %vm374, %v375, %v373
        %v377 = vld [vmem:[#allocation2] sm:$0xff]
        %v378 = vmul.f32 %v376, %v363
        %v379 = vadd.f32 %v378, 0.0
        %v380 = vadd.f32 %v377, %v379
        %381 = vst [vmem:[#allocation2] sm:$0xff] %v380
        %v382 = vld [vmem:[#allocation3] sm:$0xff]
        %v383 = vadd.f32 %v363, 0.0
        %v384 = vadd.f32 %v382, %v383
        %385 = vst [vmem:[#allocation3] sm:$0xff] %v384
        // Predicated region
        $region49: #{tpu_custom_call.1} parent=31 // pred_check
          %p386 = pneg %p353
        $region50: #{tpu_custom_call.1} parent=31 // pred_check_branch
          %388 = sbr.rel (%p386) target = $region52
        $region51: #{tpu_custom_call.1} parent=31 // pred_region
          %v389 = vld [vmem:[#allocation2] sm:$0xff]
          %390 = vadd.xlane.f32.xlu0 %v389
          %v391 = vpop.xlane.xlu0 %390
          %v392 = vrot.slane %v391, 4
          %v393 = vadd.f32 %v391, %v392
          %v394 = vrot.slane %v393, 2
          %v395 = vadd.f32 %v393, %v394
          %v396 = vrot.slane %v395, 1
          %v397 = vadd.f32 %v395, %v396
          %s398 = vtos %v397
          %v399 = vstv %s398
          %vm400 = vcmask 0
          %401 = vst.msk [vmem:[%s346] sm:$0x1] %vm400, %v399
          %v402 = vld [vmem:[#allocation3] sm:$0xff]
          %403 = vadd.xlane.f32.xlu0 %v402
          %v404 = vpop.xlane.xlu0 %403
          %v405 = vrot.slane %v404, 4
          %v406 = vadd.f32 %v404, %v405
          %v407 = vrot.slane %v406, 2
          %v408 = vadd.f32 %v406, %v407
          %v409 = vrot.slane %v408, 1
          %v410 = vadd.f32 %v408, %v409
          %s411 = vtos %v410
          %v412 = vstv %s411
          %413 = vst.msk [vmem:[%s352] sm:$0x1] %vm400, %v412
        $region52: #{tpu_custom_call.1} parent=31 // pred_fallthru
          _
        %p414 = scmp.lt.s32.totalorder %s27, 1
        %s415 = scalar_select %p414, %s27, 1
        %p416 = scmp.lt.s32.totalorder %s28, 0
        %s417 = scalar_select %p416, %s28, 0
        %s418 = sadd.s32 %s417, %s415
        %s419 = scalar_lea.vmem %s3, %s418
        %p420 = scmp.lt.s32.totalorder %s27, 1
        %s421 = scalar_select %p420, %s27, 1
        %p422 = scmp.lt.s32.totalorder %s28, 0
        %s423 = scalar_select %p422, %s28, 0
        %s424 = sadd.s32 %s423, %s421
        %s425 = scalar_lea.vmem %s4, %s424
        // Predicated region
        $region53: #{tpu_custom_call.1} parent=31 // pred_check
          %p426 = pneg %p151
        $region54: #{tpu_custom_call.1} parent=31 // pred_check_branch
          %428 = sbr.rel (%p426) target = $region56
        $region55: #{tpu_custom_call.1} parent=31 // pred_region
          _
        $region56: #{tpu_custom_call.1} parent=31 // pred_fallthru
          _
        // Predicated region
        $region57: #{tpu_custom_call.1} parent=31 // pred_check
          %p429 = pneg %p179
        $region58: #{tpu_custom_call.1} parent=31 // pred_check_branch
          %431 = sbr.rel (%p429) target = $region60
        $region59: #{tpu_custom_call.1} parent=31 // pred_region
          _
        $region60: #{tpu_custom_call.1} parent=31 // pred_fallthru
          _
      $region32: #{tpu_custom_call.1} parent=5 // pred_fallthru
        _
      %p432 = scmp.le.s32.totalorder 2, %s17
      // Predicated region
      $region61: #{tpu_custom_call.1} parent=5 // pred_check
        %p433 = pneg %p432
      $region62: #{tpu_custom_call.1} parent=5 // pred_check_branch
        %435 = sbr.rel (%p433) target = $region64
      $region63: #{tpu_custom_call.1} parent=5 // pred_region
        %s436 = ssub.s32 %s17, 2
        // Predicated region
        $region65: #{tpu_custom_call.1} parent=63 // pred_check
          %p437 = pneg %p157
        $region66: #{tpu_custom_call.1} parent=63 // pred_check_branch
          %439 = sbr.rel (%p437) target = $region68
        $region67: #{tpu_custom_call.1} parent=63 // pred_region
          %p440 = scmp.lt.s32.totalorder %s30, 1
          %s441 = scalar_select %p440, %s30, 1
          %p442 = scmp.lt.s32.totalorder %s31, 0
          %s443 = scalar_select %p442, %s31, 0
          %s444 = sadd.s32 %s443, %s441
          %s445 = scalar_lea.vmem %s3, %s444
        $region68: #{tpu_custom_call.1} parent=63 // pred_fallthru
          _
        // Predicated region
        $region69: #{tpu_custom_call.1} parent=63 // pred_check
          %p446 = pneg %p185
        $region70: #{tpu_custom_call.1} parent=63 // pred_check_branch
          %448 = sbr.rel (%p446) target = $region72
        $region71: #{tpu_custom_call.1} parent=63 // pred_region
          %p449 = scmp.lt.s32.totalorder %s30, 1
          %s450 = scalar_select %p449, %s30, 1
          %p451 = scmp.lt.s32.totalorder %s31, 0
          %s452 = scalar_select %p451, %s31, 0
          %s453 = sadd.s32 %s452, %s450
          %s454 = scalar_lea.vmem %s4, %s453
        $region72: #{tpu_custom_call.1} parent=63 // pred_fallthru
          _
      $region64: #{tpu_custom_call.1} parent=5 // pred_fallthru
        _
    $region6: #{tpu_custom_call.1} parent=1 // loop_footer
      %s21 = sadd.s32 1, %s17
    $region7: #{tpu_custom_call.1} parent=1 // loop_footer_branch
      %16 = sbr.rel target = $region3
    $region8: #{tpu_custom_call.1} parent=1 // loop_exit
      _
    %455 = vsyncpa [#allocation5], 1
    %s456 = scalar_lea.sflag [#allocation5], 1
    %457 = vsyncpa %s456, 1
    %458 = vsyncpa [#allocation7], 1
    %s459 = scalar_lea.sflag [#allocation7], 1
    %460 = vsyncpa %s459, 1

</llo_original>
